<compile_context>
chip_gen: v5e
topology: v5e:2x2
jax: 0.10.0
libtpu: 0.0.40
codegen_flags: <defaults>
</compile_context>

<pallas_src>
import functools

import jax
import jax.numpy as jnp
from jax.experimental import pallas as pl
from jax.experimental.pallas import tpu as pltpu


# ---------------------------------------------------------------------------
# Kernel: one grid step processes a TB-wide slab of the (feature-major) batch.
# Single merged activation input, single layer-1 matmul, b1 pre-folded.
#   xin_ref : (NUM+2, TB) f32   rows [0:NUM]=numerical, [NUM]=idx0, [NUM+1]=idx1 (as f32)
#   w1f_ref : (H1, V_pad+NUM)   fused [emb0@W1 + b1 ; emb1@W1 ; 0-pad ; W1_num] (transposed)
#   w2t_ref : (H2, H1)          W2 transposed
#   b2_ref  : (H2, 1)
#   out_ref : (H2, TB)          lane-dense output slab
# ---------------------------------------------------------------------------
def hydrogenium_kernel(xin_ref, w1f_ref, w2t_ref, b2_ref, out_ref, *, num, v0, v_pad):
    tb = xin_ref.shape[-1]

    # Fused one-hot over the concatenated (padded) vocab: one iota, two compares.
    idx0 = xin_ref[num:num + 1, :].astype(jnp.int32)            # (1, TB), in [0, V0)
    idx1 = xin_ref[num + 1:num + 2, :].astype(jnp.int32) + v0   # shifted into [V0, V0+V1)
    rows = jax.lax.broadcasted_iota(jnp.int32, (v_pad, tb), 0)
    onehot = ((rows == idx0) | (rows == idx1)).astype(jnp.float32)   # (V_pad, TB)

    # Layer-1 operand: [one-hot block ; numerical rows].  V_pad is 8-aligned so the
    # concat boundary sits on a sublane-tile boundary (no sublane rotation).
    operand = jnp.concatenate([onehot, xin_ref[0:num, :]], axis=0)   # (V_pad+NUM, TB)

    # Layer 1: single MXU matmul (b1 folded into the V0 block of the table) + ReLU.
    h1 = jnp.maximum(
        jnp.dot(w1f_ref[...], operand, preferred_element_type=jnp.float32), 0.0)

    # Layer 2: Linear + ReLU.
    h2 = jnp.dot(w2t_ref[...], h1, preferred_element_type=jnp.float32) + b2_ref[...]
    out_ref[...] = jnp.maximum(h2, 0.0).astype(out_ref.dtype)


# ---------------------------------------------------------------------------
# Tile selection: multiple of 128, <= cap, and (when the batch allows it) at
# least 2 balanced grid steps so the "parallel" axis feeds both v7x TensorCores.
# ---------------------------------------------------------------------------
def _select_tile(batch, tb_cap):
    n128 = -(-batch // 128)                  # 128-lane groups needed
    cap = max(1, tb_cap // 128)
    min_steps = 2 if n128 >= 2 else 1
    steps = max(min_steps, -(-n128 // cap))
    per_step = -(-n128 // steps)
    tb = per_step * 128
    grid = -(-n128 // per_step)
    bp = grid * tb
    return tb, grid, bp


# ---------------------------------------------------------------------------
# Core entry point: feature-major in, feature-major out (no standalone transposes).
#   xin_t : (NUM+2, B) f32, rows [0:NUM]=numerical, [NUM:NUM+2]=categorical idx as f32
#   returns (H2, B) in out_dtype.
# Weight pre-folding happens here; in practice it would be cached offline.
# ---------------------------------------------------------------------------
@functools.partial(jax.jit, static_argnames=("tb_cap", "out_dtype"))
def hydrogenium_forward_t(xin_t, emb0, emb1, w1, b1, w2, b2, *,
                          tb_cap=1024, out_dtype=jnp.float32):
    R, B = xin_t.shape
    NUM = R - 2
    V0, E0 = emb0.shape
    V1, E1 = emb1.shape
    H1 = w1.shape[1]
    H2 = w2.shape[1]
    assert w1.shape[0] == E0 + E1 + NUM

    # ---- One-time weight preprocessing (fold embeddings + b1 through W1).
    v_total = V0 + V1
    v_pad = -(-v_total // 8) * 8                 # sublane-aligned one-hot block
    k_fused = v_pad + NUM
    t0 = jnp.dot(emb0, w1[:E0, :], preferred_element_type=jnp.float32) \
        + b1.reshape(1, H1)                      # (V0, H1): b1 rides the single V0 hit
    t1 = jnp.dot(emb1, w1[E0:E0 + E1, :], preferred_element_type=jnp.float32)  # (V1, H1)
    fused = jnp.zeros((k_fused, H1), jnp.float32)
    fused = fused.at[:V0].set(t0).at[V0:v_total].set(t1).at[v_pad:].set(w1[E0 + E1:, :])
    w1f_t = fused.T                              # (H1, V_pad+NUM)
    w2_t = w2.T                                  # (H2, H1)
    b2_c = b2.reshape(H2, 1)                     # (H2, 1)

    # ---- Tile / grid selection and batch padding (pad columns sliced off below).
    tb, grid_steps, bp = _select_tile(B, tb_cap)
    xin_p = jnp.pad(xin_t, ((0, 0), (0, bp - B)))

    resident = lambda i: (0, 0)                  # weights: constant block index
    out_bytes = jnp.dtype(out_dtype).itemsize
    cost = pl.CostEstimate(
        flops=2 * bp * H1 * (k_fused + H2),
        transcendentals=0,
        bytes_accessed=(4 * R * bp + out_bytes * H2 * bp
                        + 4 * (H1 * k_fused + H2 * H1 + H2)),
    )

    out_t = pl.pallas_call(
        functools.partial(hydrogenium_kernel, num=NUM, v0=V0, v_pad=v_pad),
        out_shape=jax.ShapeDtypeStruct((H2, bp), out_dtype),
        grid=(grid_steps,),
        in_specs=[
            pl.BlockSpec((R, tb), lambda i: (0, i)),       # merged activations
            pl.BlockSpec((H1, k_fused), resident),         # fused emb/b1/num x W1 table
            pl.BlockSpec((H2, H1), resident),              # W2 (transposed)
            pl.BlockSpec((H2, 1), resident),               # b2
        ],
        out_specs=pl.BlockSpec((H2, tb), lambda i: (0, i)),
        compiler_params=pltpu.CompilerParams(
            dimension_semantics=("parallel",)),
        cost_estimate=cost,
    )(xin_p, w1f_t, w2_t, b2_c)

    return out_t[:, :B]


# ---------------------------------------------------------------------------
# Module-signature convenience wrapper ([batch, features] in/out).  The
# transpose/cast/concat here are only for drop-in compatibility; a pipeline
# that produces xin_t feature-major directly should call the core entry point.
# ---------------------------------------------------------------------------
@functools.partial(jax.jit, static_argnames=("tb_cap", "out_dtype"))
def hydrogenium_forward(x_categorical, x_numerical, emb0, emb1, w1, b1, w2, b2, *,
                        tb_cap=1024, out_dtype=jnp.float32):
    xin_t = jnp.concatenate(
        [x_numerical.astype(jnp.float32).T,
         x_categorical.astype(jnp.float32).T], axis=0)       # (NUM+2, B)
    out_t = hydrogenium_forward_t(xin_t, emb0, emb1, w1, b1, w2, b2,
                                  tb_cap=tb_cap, out_dtype=out_dtype)
    return out_t.T                                           # (B, H2)


# ---------------------------------------------------------------------------
# Pure-JAX reference (mirrors the PyTorch forward in eval mode).
# ---------------------------------------------------------------------------
def reference_forward(x_categorical, x_numerical, emb0, emb1, w1, b1, w2, b2):
    e0 = jnp.take(emb0, x_categorical[:, 0], axis=0)
    e1 = jnp.take(emb1, x_categorical[:, 1], axis=0)
    x = jnp.concatenate([e0, e1, x_numerical], axis=1)
    h1 = jnp.maximum(x @ w1 + b1, 0.0)
    h2 = jnp.maximum(h1 @ w2 + b2, 0.0)
    return h2


if __name__ == "__main__":
    # --- Config (mirrors the module's __init__ arguments) -------------------
    B = 300                              # non-multiple of tile -> exercises grid=2 + padding
    EMB = [(10, 4), (8, 3)]              # categorical_embeddings: [(ni, nf), ...]
    NUM = 5                              # numerical_shape
    LAYERS = [32, 16]                    # layers_dimensions
    D_IN = sum(nf for _, nf in EMB) + NUM    # 4 + 3 + 5 = 12

    key = jax.random.PRNGKey(0)
    k = jax.random.split(key, 8)

    # Deterministic parameter init (nn.Embedding ~ N(0,1); nn.Linear ~ U scaled).
    emb0 = jax.random.normal(k[0], EMB[0], dtype=jnp.float32)
    emb1 = jax.random.normal(k[1], EMB[1], dtype=jnp.float32)
    w1 = jax.random.uniform(k[2], (D_IN, LAYERS[0]), dtype=jnp.float32,
                            minval=-1.0, maxval=1.0) / jnp.sqrt(D_IN)
    b1 = jax.random.uniform(k[3], (1, LAYERS[0]), dtype=jnp.float32,
                            minval=-1.0, maxval=1.0) / jnp.sqrt(D_IN)
    w2 = jax.random.uniform(k[4], (LAYERS[0], LAYERS[1]), dtype=jnp.float32,
                            minval=-1.0, maxval=1.0) / jnp.sqrt(LAYERS[0])
    b2 = jax.random.uniform(k[5], (1, LAYERS[1]), dtype=jnp.float32,
                            minval=-1.0, maxval=1.0) / jnp.sqrt(LAYERS[0])

    # Example inputs (module signature: x_categorical int, x_numerical float).
    x_categorical = jnp.stack(
        [jax.random.randint(k[6], (B,), 0, EMB[0][0], dtype=jnp.int32),
         jax.random.randint(k[7], (B,), 0, EMB[1][0], dtype=jnp.int32)],
        axis=1,
    )                                                            # (B, 2) int32
    x_numerical = jax.random.normal(jax.random.PRNGKey(1), (B, NUM),
                                    dtype=jnp.float32)           # (B, 5) float32

    ref = reference_forward(x_categorical, x_numerical, emb0, emb1, w1, b1, w2, b2)

    # f32 output path (default): tight check against the reference.
    out = hydrogenium_forward(x_categorical, x_numerical,
                              emb0, emb1, w1, b1, w2, b2)
    out = jax.block_until_ready(out)
    assert out.shape == (B, LAYERS[-1])
    assert jnp.allclose(out, ref, atol=2e-4, rtol=2e-4), "mismatch vs. JAX reference (f32)"

    # bf16 output path (bandwidth saver for v5e/v6e): loose check, f32 accumulation kept.
    out_bf16 = hydrogenium_forward(x_categorical, x_numerical,
                                   emb0, emb1, w1, b1, w2, b2,
                                   out_dtype=jnp.bfloat16)
    out_bf16 = jax.block_until_ready(out_bf16)
    assert jnp.allclose(out_bf16.astype(jnp.float32), ref, atol=5e-2, rtol=5e-2), \
        "mismatch vs. JAX reference (bf16 output)"

    print("KERNEL_OK")
</pallas_src>

<mosaic_0001>
module attributes {stable_mosaic.version = 11 : i64} {
  func.func @hydrogenium_kernel(%arg0: i32, %arg1: memref<7x256xf32, #tpu.memory_space<vmem>>, %arg2: memref<32x29xf32, #tpu.memory_space<vmem>>, %arg3: memref<16x32xf32, #tpu.memory_space<vmem>>, %arg4: memref<16x1xf32, #tpu.memory_space<vmem>>, %arg5: memref<16x256xf32, #tpu.memory_space<vmem>>) attributes {dimension_semantics = [#tpu.dimension_semantics<parallel>], iteration_bounds = array<i64: 2>, scalar_prefetch = 0 : i64, scratch_operands = 0 : i64, tpu.core_type = #tpu.core_type<tc>, window_params = [{transform_indices = @transform_0, window_bounds = array<i64: 7, 256>}, {pipeline_mode = #tpu.pipeline_mode<synchronous>, transform_indices = @transform_1, window_bounds = array<i64: 32, 29>}, {pipeline_mode = #tpu.pipeline_mode<synchronous>, transform_indices = @transform_2, window_bounds = array<i64: 16, 32>}, {pipeline_mode = #tpu.pipeline_mode<synchronous>, transform_indices = @transform_3, window_bounds = array<i64: 16, 1>}, {transform_indices = @transform_4, window_bounds = array<i64: 16, 256>}]} {
    %c5 = arith.constant 5 : index
    %c0 = arith.constant 0 : index
    %0 = vector.load %arg1[%c5, %c0] : memref<7x256xf32, #tpu.memory_space<vmem>>, vector<1x256xf32>
    %1 = arith.fptosi %0 : vector<1x256xf32> to vector<1x256xi32>
    %c6 = arith.constant 6 : index
    %c0_0 = arith.constant 0 : index
    %2 = vector.load %arg1[%c6, %c0_0] : memref<7x256xf32, #tpu.memory_space<vmem>>, vector<1x256xf32>
    %3 = arith.fptosi %2 : vector<1x256xf32> to vector<1x256xi32>
    %c10_i32 = arith.constant 10 : i32
    %4 = vector.broadcast %c10_i32 : i32 to vector<1x256xi32>
    %5 = arith.addi %3, %4 : vector<1x256xi32>
    %6 = tpu.iota {dimensions = array<i32: 0>} : vector<24x256xi32>
    %7 = vector.broadcast %1 : vector<1x256xi32> to vector<24x256xi32>
    %8 = arith.cmpi eq, %6, %7 : vector<24x256xi32>
    %9 = vector.broadcast %5 : vector<1x256xi32> to vector<24x256xi32>
    %10 = arith.cmpi eq, %6, %9 : vector<24x256xi32>
    %11 = arith.ori %8, %10 : vector<24x256xi1>
    %12 = arith.extui %11 : vector<24x256xi1> to vector<24x256xi32>
    %13 = arith.sitofp %12 : vector<24x256xi32> to vector<24x256xf32>
    %c0_1 = arith.constant 0 : index
    %c0_2 = arith.constant 0 : index
    %14 = vector.load %arg1[%c0_1, %c0_2] : memref<7x256xf32, #tpu.memory_space<vmem>>, vector<5x256xf32>
    %15 = tpu.concatenate %13, %14 in 0 : vector<24x256xf32>, vector<5x256xf32> -> vector<29x256xf32>
    %c0_3 = arith.constant 0 : index
    %c0_4 = arith.constant 0 : index
    %16 = vector.load %arg2[%c0_3, %c0_4] : memref<32x29xf32, #tpu.memory_space<vmem>>, vector<32x29xf32>
    %cst = arith.constant dense<0.000000e+00> : vector<32x256xf32>
    %17 = tpu.matmul %16, %15, %cst {dimension_numbers = #tpu.dot_dimension_numbers<[1], [0], [0], [1], [0, 0, 1, 1], [], []>} : vector<32x29xf32>, vector<29x256xf32>, vector<32x256xf32> -> vector<32x256xf32>
    %cst_5 = arith.constant 0.000000e+00 : f32
    %18 = vector.broadcast %cst_5 : f32 to vector<32x256xf32>
    %19 = arith.maximumf %17, %18 : vector<32x256xf32>
    %c0_6 = arith.constant 0 : index
    %c0_7 = arith.constant 0 : index
    %20 = vector.load %arg3[%c0_6, %c0_7] : memref<16x32xf32, #tpu.memory_space<vmem>>, vector<16x32xf32>
    %cst_8 = arith.constant dense<0.000000e+00> : vector<16x256xf32>
    %21 = tpu.matmul %20, %19, %cst_8 {dimension_numbers = #tpu.dot_dimension_numbers<[1], [0], [0], [1], [0, 0, 1, 1], [], []>} : vector<16x32xf32>, vector<32x256xf32>, vector<16x256xf32> -> vector<16x256xf32>
    %c0_9 = arith.constant 0 : index
    %c0_10 = arith.constant 0 : index
    %22 = vector.load %arg4[%c0_9, %c0_10] : memref<16x1xf32, #tpu.memory_space<vmem>>, vector<16x1xf32>
    %23 = vector.broadcast %22 : vector<16x1xf32> to vector<16x256xf32>
    %24 = arith.addf %21, %23 : vector<16x256xf32>
    %cst_11 = arith.constant 0.000000e+00 : f32
    %25 = vector.broadcast %cst_11 : f32 to vector<16x256xf32>
    %26 = arith.maximumf %24, %25 : vector<16x256xf32>
    %c0_12 = arith.constant 0 : index
    %c0_13 = arith.constant 0 : index
    %27 = vector.load %arg5[%c0_12, %c0_13] : memref<16x256xf32, #tpu.memory_space<vmem>>, vector<16x256xf32>
    tpu.vector_store %arg5[%c0_12, %c0_13], %26 {strides = array<i32>} : memref<16x256xf32, #tpu.memory_space<vmem>>, vector<16x256xf32>,
    return
  }
  func.func @transform_0(%arg0: i32) -> (i32, i32) {
    %c0_i32 = arith.constant 0 : i32
    %c0_i32_0 = arith.constant 0 : i32
    return %c0_i32, %arg0 : i32, i32
  }
  func.func @transform_1(%arg0: i32) -> (i32, i32) {
    %c0_i32 = arith.constant 0 : i32
    %c0_i32_0 = arith.constant 0 : i32
    %c0_i32_1 = arith.constant 0 : i32
    return %c0_i32, %c0_i32_0 : i32, i32
  }
  func.func @transform_2(%arg0: i32) -> (i32, i32) {
    %c0_i32 = arith.constant 0 : i32
    %c0_i32_0 = arith.constant 0 : i32
    %c0_i32_1 = arith.constant 0 : i32
    return %c0_i32, %c0_i32_0 : i32, i32
  }
  func.func @transform_3(%arg0: i32) -> (i32, i32) {
    %c0_i32 = arith.constant 0 : i32
    %c0_i32_0 = arith.constant 0 : i32
    %c0_i32_1 = arith.constant 0 : i32
    return %c0_i32, %c0_i32_0 : i32, i32
  }
  func.func @transform_4(%arg0: i32) -> (i32, i32) {
    %c0_i32 = arith.constant 0 : i32
    %c0_i32_0 = arith.constant 0 : i32
    return %c0_i32, %arg0 : i32, i32
  }
}

</mosaic_0001>

<llo_original>
// kernel: hydrogenium_forward_t.1
$region0: #{hydrogenium_forward_t.1}
  #allocation0 [shape = 'u32[]', space=smem, size = 0x4, offset = 0x4, fixed_abs, tag = 'smem constant byte address 0x4 - core index']
  #allocation1 [shape = 'u32[72,128]{1,0:T(1,128)}', space=vmem, size = 0x9000, scoped, tag = 'internal scratch']
  %s0 = inlined_call_operand.vmem [shape: f32[7,512], index: 0, kind: input, shape index: {}]
  %s1 = inlined_call_operand.vmem [shape: f32[32,29], index: 1, kind: input, shape index: {}]
  %s2 = inlined_call_operand.vmem [shape: f32[16,32], index: 2, kind: input, shape index: {}]
  %s3 = inlined_call_operand.vmem [shape: f32[16,1], index: 3, kind: input, shape index: {}]
  %s4 = inlined_call_operand.vmem [shape: f32[16,512], index: 4, kind: output, shape index: {}]
  %s5 = sld [smem:[#allocation0]]
  $region68: #{hydrogenium_forward_t.1} parent=0
    _
  %s7 = ssub.s32 1, %s5
  %s8 = scalar_select 0, %s7, %s5
  $region1: #{hydrogenium_forward_t.1} parent=0
    #allocation2 [shape = 'u8[32768]{0}', space=vmem, size = 0x8000, scoped, tag = 'output window, operand 0']
    loop: start=0, step=1, limit=4
    $region2: #{hydrogenium_forward_t.1} parent=1 // loop_pre_header
      _
    $region3: #{hydrogenium_forward_t.1} parent=1 // loop_header
      %s10 = sphi 0, %s14
      %p11 = scmp.ge.s32.totalorder %s10, 4
      %s20 = sphi 0, %s22
      %s23 = sphi 0, %s20
      %s24 = sphi 0, %s23
      %s40 = sphi 0, %s24
      %s44 = sphi 0, %s44
      %s46 = sphi 0, %s44
      %s47 = sphi 0, %s46
      %s61 = sphi 0, %s47
      %s65 = sphi 0, %s65
      %s67 = sphi 0, %s65
      %s68 = sphi 0, %s67
      %s82 = sphi 0, %s68
      %s86 = sphi 0, %s86
      %s88 = sphi 0, %s86
      %s89 = sphi 0, %s88
      %s103 = sphi 0, %s89
      %s109 = sphi 0, %s111
      %s112 = sphi 0, %s109
      %s113 = sphi 0, %s112
      %s129 = sphi 0, %s113
    $region4: #{hydrogenium_forward_t.1} parent=1 // loop_header_branch
      %13 = sbr.rel (%p11) target = $region8
    $region5: #{hydrogenium_forward_t.1} parent=1 // loop_body
      %s15 = ssub.s32 %s10, 1
      %s16 = ssub.s32 %s10, 2
      %s17 = sadd.s32 %s10, 1
      %s18 = ssub.s32 %s10, %s17
      %p19 = scmp.eq.s32.totalorder %s18, 0
      %s21 = sadd.s32 %s20, 1
      %s22 = scalar_select %p19, %s20, %s21
      %p25 = pneg %p19
      %p26 = scmp.eq.s32.totalorder %s10, 1
      %p27 = por %p25, %p26
      %p28 = scmp.ne.s32.totalorder %s20, %s23
      %p29 = scmp.eq.s32.totalorder %s10, 0
      %p30 = por %p28, %p29
      %p31 = scmp.ne.s32.totalorder %s20, %s23
      %p32 = scmp.eq.s32.totalorder %s15, 1
      %p33 = por %p31, %p32
      %p34 = scmp.ne.s32.totalorder %s23, %s24
      %p35 = scmp.eq.s32.totalorder %s15, 0
      %p36 = por %p34, %p35
      %p37 = scmp.ne.s32.totalorder %s23, %s24
      %p38 = scmp.eq.s32.totalorder %s16, 1
      %p39 = por %p37, %p38
      %p41 = scmp.ne.s32.totalorder %s24, %s40
      %p42 = scmp.eq.s32.totalorder %s16, 0
      %p43 = por %p41, %p42
      %s45 = sadd.s32 %s44, 1
      %p48 = scmp.eq.s32.totalorder %s10, 1
      %p49 = scmp.ne.s32.totalorder %s44, %s46
      %p50 = scmp.eq.s32.totalorder %s10, 0
      %p51 = por %p49, %p50
      %p52 = scmp.ne.s32.totalorder %s44, %s46
      %p53 = scmp.eq.s32.totalorder %s15, 1
      %p54 = por %p52, %p53
      %p55 = scmp.ne.s32.totalorder %s46, %s47
      %p56 = scmp.eq.s32.totalorder %s15, 0
      %p57 = por %p55, %p56
      %p58 = scmp.ne.s32.totalorder %s46, %s47
      %p59 = scmp.eq.s32.totalorder %s16, 1
      %p60 = por %p58, %p59
      %p62 = scmp.ne.s32.totalorder %s47, %s61
      %p63 = scmp.eq.s32.totalorder %s16, 0
      %p64 = por %p62, %p63
      %s66 = sadd.s32 %s65, 1
      %p69 = scmp.eq.s32.totalorder %s10, 1
      %p70 = scmp.ne.s32.totalorder %s65, %s67
      %p71 = scmp.eq.s32.totalorder %s10, 0
      %p72 = por %p70, %p71
      %p73 = scmp.ne.s32.totalorder %s65, %s67
      %p74 = scmp.eq.s32.totalorder %s15, 1
      %p75 = por %p73, %p74
      %p76 = scmp.ne.s32.totalorder %s67, %s68
      %p77 = scmp.eq.s32.totalorder %s15, 0
      %p78 = por %p76, %p77
      %p79 = scmp.ne.s32.totalorder %s67, %s68
      %p80 = scmp.eq.s32.totalorder %s16, 1
      %p81 = por %p79, %p80
      %p83 = scmp.ne.s32.totalorder %s68, %s82
      %p84 = scmp.eq.s32.totalorder %s16, 0
      %p85 = por %p83, %p84
      %s87 = sadd.s32 %s86, 1
      %p90 = scmp.eq.s32.totalorder %s10, 1
      %p91 = scmp.ne.s32.totalorder %s86, %s88
      %p92 = scmp.eq.s32.totalorder %s10, 0
      %p93 = por %p91, %p92
      %p94 = scmp.ne.s32.totalorder %s86, %s88
      %p95 = scmp.eq.s32.totalorder %s15, 1
      %p96 = por %p94, %p95
      %p97 = scmp.ne.s32.totalorder %s88, %s89
      %p98 = scmp.eq.s32.totalorder %s15, 0
      %p99 = por %p97, %p98
      %p100 = scmp.ne.s32.totalorder %s88, %s89
      %p101 = scmp.eq.s32.totalorder %s16, 1
      %p102 = por %p100, %p101
      %p104 = scmp.ne.s32.totalorder %s89, %s103
      %p105 = scmp.eq.s32.totalorder %s16, 0
      %p106 = por %p104, %p105
      %s107 = ssub.s32 %s10, %s17
      %p108 = scmp.eq.s32.totalorder %s107, 0
      %s110 = sadd.s32 %s109, 1
      %s111 = scalar_select %p108, %s109, %s110
      %p114 = pneg %p108
      %p115 = scmp.eq.s32.totalorder %s10, 1
      %p116 = por %p114, %p115
      %p117 = scmp.ne.s32.totalorder %s109, %s112
      %p118 = scmp.eq.s32.totalorder %s10, 0
      %p119 = por %p117, %p118
      %p120 = scmp.ne.s32.totalorder %s109, %s112
      %p121 = scmp.eq.s32.totalorder %s15, 1
      %p122 = por %p120, %p121
      %p123 = scmp.ne.s32.totalorder %s112, %s113
      %p124 = scmp.eq.s32.totalorder %s15, 0
      %p125 = por %p123, %p124
      %p126 = scmp.ne.s32.totalorder %s112, %s113
      %p127 = scmp.eq.s32.totalorder %s16, 1
      %p128 = por %p126, %p127
      %p130 = scmp.ne.s32.totalorder %s113, %s129
      %p131 = scmp.eq.s32.totalorder %s16, 0
      %p132 = por %p130, %p131
      %p133 = scmp.le.s32.totalorder 1, %s10
      %p134 = scmp.lt.s32.totalorder %s10, 3
      %p135 = pnand %p133, %p134
      %p136 = pneg %p135
      // Predicated region
      $region9: #{hydrogenium_forward_t.1} parent=5 // pred_check
        _
      $region10: #{hydrogenium_forward_t.1} parent=5 // pred_check_branch
        %138 = sbr.rel (%p135) target = $region12
      $region11: #{hydrogenium_forward_t.1} parent=5 // pred_region
        %s139 = ssub.s32 %s10, 1
        // Predicated region
        $region13: #{hydrogenium_forward_t.1} parent=11 // pred_check
          %p140 = pneg %p57
        $region14: #{hydrogenium_forward_t.1} parent=11 // pred_check_branch
          %142 = sbr.rel (%p140) target = $region16
        $region15: #{hydrogenium_forward_t.1} parent=11 // pred_region
          _
        $region16: #{hydrogenium_forward_t.1} parent=11 // pred_fallthru
          _
        // Predicated region
        $region17: #{hydrogenium_forward_t.1} parent=11 // pred_check
          %p143 = pneg %p78
        $region18: #{hydrogenium_forward_t.1} parent=11 // pred_check_branch
          %145 = sbr.rel (%p143) target = $region20
        $region19: #{hydrogenium_forward_t.1} parent=11 // pred_region
          _
        $region20: #{hydrogenium_forward_t.1} parent=11 // pred_fallthru
          _
        // Predicated region
        $region21: #{hydrogenium_forward_t.1} parent=11 // pred_check
          %p146 = pneg %p99
        $region22: #{hydrogenium_forward_t.1} parent=11 // pred_check_branch
          %148 = sbr.rel (%p146) target = $region24
        $region23: #{hydrogenium_forward_t.1} parent=11 // pred_region
          _
        $region24: #{hydrogenium_forward_t.1} parent=11 // pred_fallthru
          _
      $region12: #{hydrogenium_forward_t.1} parent=5 // pred_fallthru
        _
      %p149 = scmp.lt.s32.totalorder %s10, 2
      // Predicated region
      $region25: #{hydrogenium_forward_t.1} parent=5 // pred_check
        %p150 = pneg %p149
      $region26: #{hydrogenium_forward_t.1} parent=5 // pred_check_branch
        %152 = sbr.rel (%p150) target = $region28
      $region27: #{hydrogenium_forward_t.1} parent=5 // pred_region
        // Predicated region
        $region29: #{hydrogenium_forward_t.1} parent=27 // pred_check
          %p153 = pneg %p30
        $region30: #{hydrogenium_forward_t.1} parent=27 // pred_check_branch
          %155 = sbr.rel (%p153) target = $region32
        $region31: #{hydrogenium_forward_t.1} parent=27 // pred_region
          %s156 = smul.u32 2, %s10
          %p157 = scmp.lt.s32.totalorder %s156, 3
          %s158 = scalar_select %p157, %s156, 3
          %s159 = smul.addr %s158, 8
          %s160 = scalar_lea.vmem %s0, %s159
          %s161 = smul.u32 2, %s10
        $region32: #{hydrogenium_forward_t.1} parent=27 // pred_fallthru
          _
      $region28: #{hydrogenium_forward_t.1} parent=5 // pred_fallthru
        _
      %p162 = scmp.le.s32.totalorder 1, %s10
      %p163 = scmp.lt.s32.totalorder %s10, 3
      %p164 = pnand %p162, %p163
      %p165 = pneg %p164
      // Predicated region
      $region33: #{hydrogenium_forward_t.1} parent=5 // pred_check
        _
      $region34: #{hydrogenium_forward_t.1} parent=5 // pred_check_branch
        %167 = sbr.rel (%p164) target = $region36
      $region35: #{hydrogenium_forward_t.1} parent=5 // pred_region
        %s168 = ssub.s32 %s10, 1
        %s169 = smul.u32 2, %s15
        %p170 = scmp.lt.s32.totalorder %s169, 3
        %s171 = scalar_select %p170, %s169, 3
        %s172 = smul.addr %s171, 8
        %s173 = scalar_lea.vmem %s0, %s172
        %p174 = pneg %p36
        %p175 = pneg %p33
        %p176 = pneg %p57
        %p177 = pneg %p54
        %p178 = pneg %p78
        %p179 = pneg %p75
        %p180 = pneg %p99
        %p181 = pneg %p96
        %p182 = pneg %p125
        %p183 = pneg %p122
        %s184 = sand.u32 %s112, 1
        %s185 = sand.u32 %s112, 1
        %s186 = smul.addr %s185, 32
        %s187 = scalar_lea.vmem [#allocation2], %s186
        %s188 = smul.u32 2, %s15
        %p189 = scmp.lt.s32.totalorder %s188, 3
        %s190 = scalar_select %p189, %s188, 3
        %s191 = smul.addr %s190, 8
        %s192 = scalar_lea.vmem %s0, %s191
        %s193 = smul.u32 2, %s15
        %s194 = smul.u32 2, %s15
        %s195 = scalar_lea.vmem %s192, 5
        %v196 = vld [vmem:[%s195] ss:$8 sm:$0x3]
        %v197 = vcvt.f32.s32.to.zero.pseudo %v196
        %s198 = scalar_lea.vmem %s192, 6
        %v199 = vld [vmem:[%s198] ss:$8 sm:$0x3]
        %v200 = vcvt.f32.s32.to.zero.pseudo %v199
        %v201 = vadd.s32 %v200, 10
        %v202 = vlaneseq
        %v203 = vshrl.u32 %v202, 7
        %v204 = vadd.s32 %v203, 8
        %v205 = vadd.s32 %v203, 16
        %v206 = vperm.slane %v197, 0
        %v207 = vperm.slane %v197, 1
        %vm208 = vcmp.eq.s32.totalorder %v203, %v206
        %vm209 = vcmp.eq.s32.totalorder %v203, %v207
        %vm210 = vcmp.eq.s32.totalorder %v204, %v206
        %vm211 = vcmp.eq.s32.totalorder %v204, %v207
        %vm212 = vcmp.eq.s32.totalorder %v205, %v206
        %vm213 = vcmp.eq.s32.totalorder %v205, %v207
        %v214 = vperm.slane %v201, 0
        %v215 = vperm.slane %v201, 1
        %vm216 = vcmp.eq.s32.totalorder %v203, %v214
        %vm217 = vcmp.eq.s32.totalorder %v203, %v215
        %vm218 = vcmp.eq.s32.totalorder %v204, %v214
        %vm219 = vcmp.eq.s32.totalorder %v204, %v215
        %vm220 = vcmp.eq.s32.totalorder %v205, %v214
        %vm221 = vcmp.eq.s32.totalorder %v205, %v215
        %vm222 = vmor %vm208, %vm216
        %vm223 = vmor %vm209, %vm217
        %vm224 = vmor %vm210, %vm218
        %vm225 = vmor %vm211, %vm219
        %vm226 = vmor %vm212, %vm220
        %vm227 = vmor %vm213, %vm221
        %v228 = vsel %vm222, 1, 0
        %v229 = vsel %vm223, 1, 0
        %v230 = vsel %vm224, 1, 0
        %v231 = vsel %vm225, 1, 0
        %v232 = vsel %vm226, 1, 0
        %v233 = vsel %vm227, 1, 0
        %v234 = vcvt.s32.f32 %v228
        %v235 = vcvt.s32.f32 %v229
        %v236 = vcvt.s32.f32 %v230
        %v237 = vcvt.s32.f32 %v231
        %v238 = vcvt.s32.f32 %v232
        %v239 = vcvt.s32.f32 %v233
        %v240 = vld [vmem:[%s192] sm:$0x1f]
        %v241 = vld [vmem:[%s192 + $0x8] sm:$0x1f]
        %v242 = vld [vmem:[%s1] sm:$0xff]
        %v243 = vld [vmem:[%s1 + $0x8] sm:$0xff]
        %v244 = vld [vmem:[%s1 + $0x10] sm:$0xff]
        %v245 = vld [vmem:[%s1 + $0x18] sm:$0xff]
        %vm246 = vcmask 236544
        %v248 = vsel %vm246, %v242, 0
        %v251 = vsel %vm246, %v243, 0
        %v254 = vsel %vm246, %v244, 0
        %v257 = vsel %vm246, %v245, 0
        %vm259 = vcmask 1044480
        %v261 = vsel %vm259, %v240, 0
        %v264 = vsel %vm259, %v241, 0
        %266 = vmatpush.msra.mxu0 0.0
        %267 = vmatpush.msra.mxu0 0.0
        %268 = vmatpush.msra.mxu0 0.0
        %269 = vmatpush.msra.mxu0 0.0
        %270 = vmatpush.msra.mxu0 0.0
        %271 = vmatpush.msra.mxu0 0.0
        %272 = vmatpush.msra.mxu0 0.0
        %273 = vmatpush.msra.mxu0 0.0
        %274 = vmatpush.msra.mxu0 0.0
        %275 = vmatpush.msra.mxu0 0.0
        %276 = vmatpush.msra.mxu0 0.0
        %277 = vmatpush.msra.mxu0 0.0
        %278 = vmatpush.msra.mxu0 %v261
        %279 = vmatpush.msra.mxu0 %v238
        %280 = vmatpush.msra.mxu0 %v236
        %281 = vmatpush.msra.mxu0 %v234
        %282 = vmatmul.f32.gmra.mxu0 %v248
        %v283 = vpop.f32.mrf.mxu0
        %v284 = vadd.f32 0.0, %v283
        %285 = vmatmul.f32.gmra.mxu0 %v251
        %v286 = vpop.f32.mrf.mxu0
        %v287 = vadd.f32 0.0, %v286
        %288 = vmatmul.f32.gmra.mxu0 %v254
        %v289 = vpop.f32.mrf.mxu0
        %v290 = vadd.f32 0.0, %v289
        %291 = vmatmul.f32.gmra.mxu0 %v257
        %v292 = vpop.f32.mrf.mxu0
        %v293 = vadd.f32 0.0, %v292
        %294 = vdwg.mxu0
        %295 = vmatpush.msra.mxu0 0.0
        %296 = vmatpush.msra.mxu0 0.0
        %297 = vmatpush.msra.mxu0 0.0
        %298 = vmatpush.msra.mxu0 0.0
        %299 = vmatpush.msra.mxu0 0.0
        %300 = vmatpush.msra.mxu0 0.0
        %301 = vmatpush.msra.mxu0 0.0
        %302 = vmatpush.msra.mxu0 0.0
        %303 = vmatpush.msra.mxu0 0.0
        %304 = vmatpush.msra.mxu0 0.0
        %305 = vmatpush.msra.mxu0 0.0
        %306 = vmatpush.msra.mxu0 0.0
        %307 = vmatpush.msra.mxu0 %v264
        %308 = vmatpush.msra.mxu0 %v239
        %309 = vmatpush.msra.mxu0 %v237
        %310 = vmatpush.msra.mxu0 %v235
        %311 = vmatmul.f32.gmra.mxu0 %v248
        %v312 = vpop.f32.mrf.mxu0
        %v313 = vadd.f32 0.0, %v312
        %314 = vmatmul.f32.gmra.mxu0 %v251
        %v315 = vpop.f32.mrf.mxu0
        %v316 = vadd.f32 0.0, %v315
        %317 = vmatmul.f32.gmra.mxu0 %v254
        %v318 = vpop.f32.mrf.mxu0
        %v319 = vadd.f32 0.0, %v318
        %320 = vmatmul.f32.gmra.mxu0 %v257
        %v321 = vpop.f32.mrf.mxu0
        %v322 = vadd.f32 0.0, %v321
        %323 = vdwg.mxu0
        %v324 = vmax.f32 %v284, 0.0
        %v325 = vmax.f32 %v313, 0.0
        %v326 = vmax.f32 %v287, 0.0
        %v327 = vmax.f32 %v316, 0.0
        %v328 = vmax.f32 %v290, 0.0
        %v329 = vmax.f32 %v319, 0.0
        %v330 = vmax.f32 %v293, 0.0
        %v331 = vmax.f32 %v322, 0.0
        %v332 = vld [vmem:[%s2] sm:$0xff]
        %v333 = vld [vmem:[%s2 + $0x8] sm:$0xff]
        %v334 = vld [vmem:[%s3] sm:$0xff]
        %v335 = vld [vmem:[%s3 + $0x8] sm:$0xff]
        %337 = vset.pattern.permute.xlu0 0
        %338 = vperm.xlu0 %337, %v334
        %v339 = vpop.permute.xlu0 %338
        %342 = vset.pattern.permute.xlu0 0
        %343 = vperm.xlu0 %342, %v335
        %v344 = vpop.permute.xlu0 %343
        %vm346 = vcmask 261120
        %v348 = vsel %vm346, %v332, 0
        %v351 = vsel %vm346, %v333, 0
        %353 = vmatpush.msra.mxu0 0.0
        %354 = vmatpush.msra.mxu0 0.0
        %355 = vmatpush.msra.mxu0 0.0
        %356 = vmatpush.msra.mxu0 0.0
        %357 = vmatpush.msra.mxu0 0.0
        %358 = vmatpush.msra.mxu0 0.0
        %359 = vmatpush.msra.mxu0 0.0
        %360 = vmatpush.msra.mxu0 0.0
        %361 = vmatpush.msra.mxu0 0.0
        %362 = vmatpush.msra.mxu0 0.0
        %363 = vmatpush.msra.mxu0 0.0
        %364 = vmatpush.msra.mxu0 0.0
        %365 = vmatpush.msra.mxu0 %v330
        %366 = vmatpush.msra.mxu0 %v328
        %367 = vmatpush.msra.mxu0 %v326
        %368 = vmatpush.msra.mxu0 %v324
        %369 = vmatmul.f32.gmra.mxu0 %v348
        %v370 = vpop.f32.mrf.mxu0
        %v371 = vadd.f32 %v339, %v370
        %372 = vmatmul.f32.gmra.mxu0 %v351
        %v373 = vpop.f32.mrf.mxu0
        %v374 = vadd.f32 %v344, %v373
        %375 = vdwg.mxu0
        %376 = vmatpush.msra.mxu0 0.0
        %377 = vmatpush.msra.mxu0 0.0
        %378 = vmatpush.msra.mxu0 0.0
        %379 = vmatpush.msra.mxu0 0.0
        %380 = vmatpush.msra.mxu0 0.0
        %381 = vmatpush.msra.mxu0 0.0
        %382 = vmatpush.msra.mxu0 0.0
        %383 = vmatpush.msra.mxu0 0.0
        %384 = vmatpush.msra.mxu0 0.0
        %385 = vmatpush.msra.mxu0 0.0
        %386 = vmatpush.msra.mxu0 0.0
        %387 = vmatpush.msra.mxu0 0.0
        %388 = vmatpush.msra.mxu0 %v331
        %389 = vmatpush.msra.mxu0 %v329
        %390 = vmatpush.msra.mxu0 %v327
        %391 = vmatpush.msra.mxu0 %v325
        %392 = vmatmul.f32.gmra.mxu0 %v348
        %v393 = vpop.f32.mrf.mxu0
        %v394 = vadd.f32 %v339, %v393
        %395 = vmatmul.f32.gmra.mxu0 %v351
        %v396 = vpop.f32.mrf.mxu0
        %v397 = vadd.f32 %v344, %v396
        %398 = vdwg.mxu0
        %v399 = vmax.f32 %v371, 0.0
        %v400 = vmax.f32 %v394, 0.0
        %v401 = vmax.f32 %v374, 0.0
        %v402 = vmax.f32 %v397, 0.0
        %403 = vst [vmem:[%s187] sm:$0xff] %v399
        %404 = vst [vmem:[%s187 + $0x8] sm:$0xff] %v400
        %405 = vst [vmem:[%s187 + $0x10] sm:$0xff] %v401
        %406 = vst [vmem:[%s187 + $0x18] sm:$0xff] %v402
        %s407 = sand.u32 %s112, 1
        %s408 = sand.u32 %s112, 1
        %s409 = smul.addr %s408, 32
        %s410 = scalar_lea.vmem [#allocation2], %s409
        // Predicated region
        $region37: #{hydrogenium_forward_t.1} parent=35 // pred_check
          %p411 = pneg %p122
        $region38: #{hydrogenium_forward_t.1} parent=35 // pred_check_branch
          %413 = sbr.rel (%p411) target = $region40
        $region39: #{hydrogenium_forward_t.1} parent=35 // pred_region
          %s414 = smul.u32 2, %s15
          %s415 = smul.addr %s414, 8
          %s416 = scalar_lea.vmem %s4, %s415
          // Predicated region
          $region41: #{hydrogenium_forward_t.1} parent=39 // pred_check
            _
          $region42: #{hydrogenium_forward_t.1} parent=39 // pred_check_branch
            %418 = sbr.rel (0) target = $region44
          $region43: #{hydrogenium_forward_t.1} parent=39 // pred_region
            // Predicated region
            $region45: #{hydrogenium_forward_t.1} parent=43 // pred_check
              _
            $region46: #{hydrogenium_forward_t.1} parent=43 // pred_check_branch
              %420 = sbr.rel (0) target = $region48
            $region47: #{hydrogenium_forward_t.1} parent=43 // pred_region
              loop: start=0, step=1, limit=1
              $region49: #{hydrogenium_forward_t.1} parent=47 // loop_pre_header
                _
              $region50: #{hydrogenium_forward_t.1} parent=47 // loop_header
                %s422 = sphi 0, %s426
                %p423 = scmp.ge.s32.totalorder %s422, 1
                %s427 = sphi %s410, %s410
                %s428 = sphi %s416, %s416
              $region51: #{hydrogenium_forward_t.1} parent=47 // loop_header_branch
                %425 = sbr.rel (%p423) target = $region55
              $region52: #{hydrogenium_forward_t.1} parent=47 // loop_body
                %v429 = vld [vmem:[%s427] sm:$0xff]
                %430 = vst [vmem:[%s428] sm:$0xff] %v429
                %v431 = vld [vmem:[%s427 + $0x8] sm:$0xff]
                %432 = vst [vmem:[%s428 + $0x8] sm:$0xff] %v431
                %v433 = vld [vmem:[%s427 + $0x10] sm:$0xff]
                %434 = vst [vmem:[%s428 + $0x20] sm:$0xff] %v433
                %v435 = vld [vmem:[%s427 + $0x18] sm:$0xff]
                %436 = vst [vmem:[%s428 + $0x28] sm:$0xff] %v435
              $region53: #{hydrogenium_forward_t.1} parent=47 // loop_footer
                %s426 = sadd.s32 1, %s422
              $region54: #{hydrogenium_forward_t.1} parent=47 // loop_footer_branch
                %421 = sbr.rel target = $region50
              $region55: #{hydrogenium_forward_t.1} parent=47 // loop_exit
                _
            $region48: #{hydrogenium_forward_t.1} parent=43 // pred_fallthru
              _
            // Predicated region
            $region56: #{hydrogenium_forward_t.1} parent=43 // pred_check
              _
            $region57: #{hydrogenium_forward_t.1} parent=43 // pred_check_branch
              %438 = sbr.rel target = $region59
            $region58: #{hydrogenium_forward_t.1} parent=43 // pred_region
              _
            $region59: #{hydrogenium_forward_t.1} parent=43 // pred_fallthru
              _
          $region44: #{hydrogenium_forward_t.1} parent=39 // pred_fallthru
            _
          %439 = vnop
        $region40: #{hydrogenium_forward_t.1} parent=35 // pred_fallthru
          _
      $region36: #{hydrogenium_forward_t.1} parent=5 // pred_fallthru
        _
      %p440 = scmp.le.s32.totalorder 2, %s10
      // Predicated region
      $region60: #{hydrogenium_forward_t.1} parent=5 // pred_check
        %p441 = pneg %p440
      $region61: #{hydrogenium_forward_t.1} parent=5 // pred_check_branch
        %443 = sbr.rel (%p441) target = $region63
      $region62: #{hydrogenium_forward_t.1} parent=5 // pred_region
        %s444 = ssub.s32 %s10, 2
        // Predicated region
        $region64: #{hydrogenium_forward_t.1} parent=62 // pred_check
          %p445 = pneg %p128
        $region65: #{hydrogenium_forward_t.1} parent=62 // pred_check_branch
          %447 = sbr.rel (%p445) target = $region67
        $region66: #{hydrogenium_forward_t.1} parent=62 // pred_region
          %s448 = sand.u32 %s113, 1
          %s449 = sand.u32 %s113, 1
          %s450 = smul.addr %s449, 32
          %s451 = scalar_lea.vmem [#allocation2], %s450
        $region67: #{hydrogenium_forward_t.1} parent=62 // pred_fallthru
          _
      $region63: #{hydrogenium_forward_t.1} parent=5 // pred_fallthru
        _
    $region6: #{hydrogenium_forward_t.1} parent=1 // loop_footer
      %s14 = sadd.s32 1, %s10
    $region7: #{hydrogenium_forward_t.1} parent=1 // loop_footer_branch
      %9 = sbr.rel target = $region3
    $region8: #{hydrogenium_forward_t.1} parent=1 // loop_exit
      _

</llo_original>
